<compile_context>
chip_gen: v7x
topology: tpu7x:2x2x1
jax: 0.10.0
libtpu: 0.0.40
codegen_flags: <defaults>
</compile_context>

<pallas_src>
import jax
import jax.numpy as jnp
from jax.experimental import pallas as pl
from jax.experimental.pallas import tpu as pltpu

_LANE = 128


def suggested_activation_dtype():
    """bf16 Gaussian-activation math only where the VPU/EUP support it natively
    (v6e / v7x); keep f32 on v5e and older.  scale=30 amplifies activation
    rounding, so only opt in when the extra numerical error is acceptable."""
    kind = jax.devices()[0].device_kind.lower()
    if "v6" in kind or "v7" in kind:
        return jnp.bfloat16
    return jnp.float32


def _make_mlp_kernel(num_hidden, neg_scale_sq, final_bias, matmul_dtype,
                     activation_dtype):
    """Builds a Pallas kernel computing the full MLP for one lane-tile of points.

    Ref order:
      x^T tile (in_features, tm)              -- already matmul_dtype
      w0       (hidden, in_features)          -- matmul_dtype
      [wh      (num_hidden, hidden, hidden)]  -- matmul_dtype, if num_hidden > 0
      b_all    (num_hidden + 1, hidden, 1)    -- f32 (added to the f32 accumulator)
      wf       (out_features, hidden)         -- matmul_dtype
      [bf      (out_features, 1)]             -- f32, if final_bias
      out^T tile (out_features, tm)           -- f32
    """

    def kernel(*refs):
        it = iter(refs)
        x_ref = next(it)
        w0_ref = next(it)
        wh_ref = next(it) if num_hidden > 0 else None
        b_ref = next(it)
        wf_ref = next(it)
        bf_ref = next(it) if final_bias else None
        out_ref = next(it)

        def gauss(z):
            # exp on the EUP; the single fused square*const co-issues on the VPU.
            u = z.astype(activation_dtype)
            return jnp.exp((u * u) * neg_scale_sq)

        # First Gaussian layer (K = in_features).
        h = x_ref[...]                                        # (in, tm), lane-dense
        z = jnp.dot(w0_ref[...], h, preferred_element_type=jnp.float32) + b_ref[0]
        h = gauss(z).astype(matmul_dtype)

        # Hidden Gaussian layers (static unroll; weights carved from the packed ref).
        for l in range(num_hidden):
            z = (jnp.dot(wh_ref[l], h, preferred_element_type=jnp.float32)
                 + b_ref[l + 1])
            h = gauss(z).astype(matmul_dtype)

        # Final linear layer.
        out = jnp.dot(wf_ref[...], h, preferred_element_type=jnp.float32)
        if final_bias:
            out = out + bf_ref[...]
        out_ref[...] = out.astype(out_ref.dtype)

    return kernel


def gaussian_model_forward(
    x,
    params,
    *,
    scale=30.0,
    final_bias=False,
    tm=8192,
    matmul_dtype=jnp.bfloat16,
    activation_dtype=jnp.float32,
    min_grid=2,
):
    """Runs the GaussianModel forward pass as one fused Pallas kernel.

    Args:
      x: (N, in_features) float32 array of coordinates (any N; padded internally).
      params: dict with keys
        'gauss_ws': list of (dout, din)   Gaussian-layer weights (PyTorch layout),
        'gauss_bs': list of (dout, 1)     Gaussian-layer biases,
        'final_w' : (out_features, hidden) final linear weight,
        'final_b' : optional (out_features, 1) final bias (if final_bias).
      tm: point tile on the lane axis; large tiles amortize the ~0.35us per-step
        overhead and VMEM use stays tiny.
      matmul_dtype: MXU operand dtype.  bf16 (default) avoids multi-pass f32
        matmul emulation; accumulation is always f32.  Use jnp.float32 when
        tight numerics are required.
      activation_dtype: dtype of the Gaussian square/exp math.  f32 default;
        see suggested_activation_dtype() for the v6e/v7x bf16-EUP option.
      min_grid: minimum number of grid steps (when N allows) so the "parallel"
        grid axis can be sharded across v7x's 2 TensorCores.
    Returns:
      (N, out_features) float32 array.
    """
    N, in_features = x.shape
    gauss_ws = params["gauss_ws"]
    gauss_bs = params["gauss_bs"]
    final_w = params["final_w"]
    num_gauss = len(gauss_ws)
    num_hidden = num_gauss - 1
    hidden = int(gauss_ws[0].shape[0])
    out_features = int(final_w.shape[0])

    # --- lane-aligned tiling: biggest tile that still leaves >= min_grid steps ---
    tm = max(_LANE, (int(tm) // _LANE) * _LANE)
    n_blocks = pl.cdiv(int(N), _LANE)                  # 128-point lane blocks
    if n_blocks >= min_grid:
        tm = min(tm, max(_LANE, (n_blocks // min_grid) * _LANE))
    else:
        tm = min(tm, n_blocks * _LANE)
    n_pad = pl.cdiv(int(N), tm) * tm
    grid = n_pad // tm

    # Transpose / pad / cast once in the wrapper (feature-major, lane-dense layout).
    xt = jnp.pad(x.astype(jnp.float32), ((0, n_pad - N), (0, 0))).T
    xt = xt.astype(matmul_dtype)                       # (in_features, n_pad)

    # --- pack + pre-cast parameters once (fewer BlockSpecs, no per-step casts) ---
    w0 = gauss_ws[0].astype(matmul_dtype)                               # (hidden, in)
    wh = (jnp.stack([w.astype(matmul_dtype) for w in gauss_ws[1:]])
          if num_hidden > 0 else None)                                  # (L, hidden, hidden)
    b_all = jnp.stack([b.reshape(-1, 1).astype(jnp.float32)
                       for b in gauss_bs])                              # (L+1, hidden, 1)
    wf = final_w.astype(matmul_dtype)                                   # (out, hidden)

    kernel = _make_mlp_kernel(num_hidden, -(float(scale) ** 2), final_bias,
                              matmul_dtype, activation_dtype)

    # Parameters are constant across the grid: whole-array VMEM residency; only the
    # x^T and out^T tiles are streamed (and stay fully hidden at ~320 flop/byte).
    vmem_whole = pl.BlockSpec(memory_space=pltpu.MemorySpace.VMEM)

    operands = [xt, w0]
    in_specs = [pl.BlockSpec((in_features, tm), lambda i: (0, i)), vmem_whole]
    if num_hidden > 0:
        operands.append(wh)
        in_specs.append(vmem_whole)
    operands.append(b_all)
    in_specs.append(vmem_whole)
    operands.append(wf)
    in_specs.append(vmem_whole)
    if final_bias:
        operands.append(params["final_b"].reshape(-1, 1).astype(jnp.float32))
        in_specs.append(vmem_whole)
    out_spec = pl.BlockSpec((out_features, tm), lambda i: (0, i))

    # Advisory cost estimate for XLA scheduling around the custom call.
    mm_macs = sum(int(w.shape[0]) * int(w.shape[1]) for w in gauss_ws)
    mm_macs += out_features * hidden
    flops = 2 * int(n_pad) * mm_macs
    transcendentals = int(n_pad) * sum(int(w.shape[0]) for w in gauss_ws)
    itemsize = jnp.dtype(matmul_dtype).itemsize
    param_bytes = sum(int(a.size) * int(a.dtype.itemsize) for a in operands[1:])
    bytes_accessed = int(n_pad) * (in_features * itemsize + out_features * 4) + param_bytes

    # Scoped-VMEM guard: only engage above the smallest per-chip default (16 MiB on
    # v5e; 32 MiB on v6e/v7x), and never below 32 MiB / above v7x's 64 MiB physical.
    max_width = max(hidden, out_features, in_features)
    vmem_est = (param_bytes
                + 2 * in_features * tm * itemsize       # double-buffered input tile
                + 2 * out_features * tm * 4             # double-buffered output tile
                + 8 * max_width * tm * 4                # headroom for z/h/exp temporaries
                + (1 << 20))
    vmem_limit = None
    if vmem_est > (16 << 20):
        vmem_limit = int(min(max(vmem_est, 32 << 20), 64 << 20))

    fn = pl.pallas_call(
        kernel,
        out_shape=jax.ShapeDtypeStruct((out_features, n_pad), jnp.float32),
        grid=(grid,),
        in_specs=in_specs,
        out_specs=out_spec,
        compiler_params=pltpu.CompilerParams(
            dimension_semantics=("parallel",),
            vmem_limit_bytes=vmem_limit,
        ),
        cost_estimate=pl.CostEstimate(
            flops=flops,
            transcendentals=transcendentals,
            bytes_accessed=bytes_accessed,
        ),
    )
    out_t = fn(*operands)                 # (out_features, n_pad)
    return out_t[:, :N].T                 # (N, out_features)


def init_gaussian_model_params(
    key,
    in_features,
    out_features,
    hidden_features=32,
    hidden_layers=3,
    weight_init=0.1,
    final_bias=False,
):
    """Deterministic synthetic init matching the module's parameter shapes.

    Weights are stored in PyTorch nn.Linear layout: (out_features, in_features);
    biases as (out_features, 1).
    """
    dims = [in_features] + [hidden_features] * (hidden_layers + 1)
    gauss_ws, gauss_bs = [], []
    for din, dout in zip(dims[:-1], dims[1:]):
        key, kw, kb = jax.random.split(key, 3)
        gauss_ws.append(
            jax.random.uniform(kw, (dout, din), jnp.float32, -weight_init, weight_init)
        )
        gauss_bs.append(
            jax.random.uniform(kb, (dout, 1), jnp.float32, -weight_init, weight_init)
        )
    key, kf = jax.random.split(key)
    final_w = jax.random.uniform(
        kf, (out_features, hidden_features), jnp.float32, -weight_init, weight_init
    )
    params = {"gauss_ws": gauss_ws, "gauss_bs": gauss_bs, "final_w": final_w}
    if final_bias:
        key, kfb = jax.random.split(key)
        params["final_b"] = jax.random.uniform(
            kfb, (out_features, 1), jnp.float32, -weight_init, weight_init
        )
    return params


def _reference_forward(x, params, scale=30.0, final_bias=False):
    """Pure-JAX f32 reference in the original (points, features) layout."""
    neg_s2 = -(scale * scale)
    h = x
    for w, b in zip(params["gauss_ws"], params["gauss_bs"]):
        z = h @ w.T + b.reshape(1, -1)
        h = jnp.exp((z * z) * neg_s2)
    out = h @ params["final_w"].T
    if final_bias:
        out = out + params["final_b"].reshape(1, -1)
    return out


def _reference_forward_lowp(x, params, scale=30.0, final_bias=False,
                            matmul_dtype=jnp.bfloat16,
                            activation_dtype=jnp.float32):
    """Pure-JAX reference mirroring the kernel's cast points (bf16 MXU operands,
    f32 accumulation, activation in activation_dtype)."""
    neg_s2 = -(scale * scale)
    h = x.astype(matmul_dtype)
    for w, b in zip(params["gauss_ws"], params["gauss_bs"]):
        z = jnp.dot(h, w.astype(matmul_dtype).T, preferred_element_type=jnp.float32)
        z = z + b.reshape(1, -1).astype(jnp.float32)
        u = z.astype(activation_dtype)
        h = jnp.exp((u * u) * neg_s2).astype(matmul_dtype)
    out = jnp.dot(h, params["final_w"].astype(matmul_dtype).T,
                  preferred_element_type=jnp.float32)
    if final_bias:
        out = out + params["final_b"].reshape(1, -1).astype(jnp.float32)
    return out


if __name__ == "__main__":
    key = jax.random.PRNGKey(0)

    # Small shapes consistent with the INR forward: N coordinate samples of
    # dimension in_features=2 (e.g. lat/lon), hidden=32, 3 hidden layers, 3 outputs.
    # N is deliberately NOT a multiple of the tile to exercise the padded grid.
    N, in_features, out_features = 1000, 2, 3
    hidden_features, hidden_layers = 32, 3
    scale_gaussian = 30.0
    final_bias = False  # matches the module default

    key, kx, kp = jax.random.split(key, 3)
    x = jax.random.uniform(kx, (N, in_features), jnp.float32, -1.0, 1.0)
    params = init_gaussian_model_params(
        kp,
        in_features,
        out_features,
        hidden_features=hidden_features,
        hidden_layers=hidden_layers,
        weight_init=0.1,
        final_bias=final_bias,
    )

    # Fast default path: bf16 MXU operands, f32 accumulation + f32 Gaussian math.
    out_fast = gaussian_model_forward(
        x, params, scale=scale_gaussian, final_bias=final_bias
    )
    out_fast = jax.block_until_ready(out_fast)
    assert out_fast.shape == (N, out_features)
    assert bool(jnp.isfinite(out_fast).all())
    ref_lowp = _reference_forward_lowp(
        x, params, scale=scale_gaussian, final_bias=final_bias,
        matmul_dtype=jnp.bfloat16, activation_dtype=jnp.float32,
    )
    # bf16 operand rounding is amplified by scale=30; compare against the
    # cast-mirroring reference with a loosened tolerance.
    assert jnp.allclose(out_fast, ref_lowp, atol=2e-2, rtol=2e-2)

    # Exact-dtype path: f32 everywhere; strict check against the f32 reference
    # (exercises the same kernel / packing / tiling code).
    out_f32 = gaussian_model_forward(
        x, params, scale=scale_gaussian, final_bias=final_bias,
        matmul_dtype=jnp.float32, activation_dtype=jnp.float32,
    )
    out_f32 = jax.block_until_ready(out_f32)
    ref_f32 = _reference_forward(x, params, scale=scale_gaussian,
                                 final_bias=final_bias)
    assert jnp.allclose(out_f32, ref_f32, atol=2e-5, rtol=2e-5)

    print("KERNEL_OK")
</pallas_src>

<mosaic_0001>
module attributes {stable_mosaic.version = 11 : i64} {
  func.func @kernel(%arg0: i32, %arg1: memref<2x512xbf16, #tpu.memory_space<vmem>>, %arg2: memref<32x2xbf16, #tpu.memory_space<vmem>>, %arg3: memref<3x32x32xbf16, #tpu.memory_space<vmem>>, %arg4: memref<4x32x1xf32, #tpu.memory_space<vmem>>, %arg5: memref<3x32xbf16, #tpu.memory_space<vmem>>, %arg6: memref<3x512xf32, #tpu.memory_space<vmem>>) attributes {dimension_semantics = [#tpu.dimension_semantics<parallel>], iteration_bounds = array<i64: 2>, scalar_prefetch = 0 : i64, scratch_operands = 0 : i64, tpu.core_type = #tpu.core_type<tc>, window_params = [{transform_indices = @transform_0, window_bounds = array<i64: 2, 512>}, {pipeline_mode = #tpu.pipeline_mode<synchronous>, transform_indices = @transform_1, window_bounds = array<i64: 32, 2>}, {pipeline_mode = #tpu.pipeline_mode<synchronous>, transform_indices = @transform_2, window_bounds = array<i64: 3, 32, 32>}, {pipeline_mode = #tpu.pipeline_mode<synchronous>, transform_indices = @transform_3, window_bounds = array<i64: 4, 32, 1>}, {pipeline_mode = #tpu.pipeline_mode<synchronous>, transform_indices = @transform_4, window_bounds = array<i64: 3, 32>}, {transform_indices = @transform_5, window_bounds = array<i64: 3, 512>}]} {
    %c0 = arith.constant 0 : index
    %c0_0 = arith.constant 0 : index
    %0 = vector.load %arg1[%c0, %c0_0] : memref<2x512xbf16, #tpu.memory_space<vmem>>, vector<2x512xbf16>
    %c0_1 = arith.constant 0 : index
    %c0_2 = arith.constant 0 : index
    %1 = vector.load %arg2[%c0_1, %c0_2] : memref<32x2xbf16, #tpu.memory_space<vmem>>, vector<32x2xbf16>
    %cst = arith.constant dense<0.000000e+00> : vector<32x512xf32>
    %2 = tpu.matmul %1, %0, %cst {dimension_numbers = #tpu.dot_dimension_numbers<[1], [0], [0], [1], [0, 0, 1, 1], [], []>} : vector<32x2xbf16>, vector<2x512xbf16>, vector<32x512xf32> -> vector<32x512xf32>
    %c0_3 = arith.constant 0 : index
    %c0_4 = arith.constant 0 : index
    %c0_5 = arith.constant 0 : index
    %3 = vector.load %arg4[%c0_3, %c0_4, %c0_5] : memref<4x32x1xf32, #tpu.memory_space<vmem>>, vector<1x32x1xf32>
    %4 = vector.shape_cast %3 : vector<1x32x1xf32> to vector<32x1xf32>
    %5 = vector.broadcast %4 : vector<32x1xf32> to vector<32x512xf32>
    %6 = arith.addf %2, %5 : vector<32x512xf32>
    %7 = arith.mulf %6, %6 : vector<32x512xf32>
    %cst_6 = arith.constant -9.000000e+02 : f32
    %8 = vector.broadcast %cst_6 : f32 to vector<32x512xf32>
    %9 = arith.mulf %7, %8 : vector<32x512xf32>
    %10 = math.exp %9 : vector<32x512xf32>
    %11 = arith.truncf %10 : vector<32x512xf32> to vector<32x512xbf16>
    %c0_7 = arith.constant 0 : index
    %c0_8 = arith.constant 0 : index
    %c0_9 = arith.constant 0 : index
    %12 = vector.load %arg3[%c0_7, %c0_8, %c0_9] : memref<3x32x32xbf16, #tpu.memory_space<vmem>>, vector<1x32x32xbf16>
    %13 = vector.shape_cast %12 : vector<1x32x32xbf16> to vector<32x32xbf16>
    %cst_10 = arith.constant dense<0.000000e+00> : vector<32x512xf32>
    %14 = tpu.matmul %13, %11, %cst_10 {dimension_numbers = #tpu.dot_dimension_numbers<[1], [0], [0], [1], [0, 0, 1, 1], [], []>} : vector<32x32xbf16>, vector<32x512xbf16>, vector<32x512xf32> -> vector<32x512xf32>
    %c1 = arith.constant 1 : index
    %c0_11 = arith.constant 0 : index
    %c0_12 = arith.constant 0 : index
    %15 = vector.load %arg4[%c1, %c0_11, %c0_12] : memref<4x32x1xf32, #tpu.memory_space<vmem>>, vector<1x32x1xf32>
    %16 = vector.shape_cast %15 : vector<1x32x1xf32> to vector<32x1xf32>
    %17 = vector.broadcast %16 : vector<32x1xf32> to vector<32x512xf32>
    %18 = arith.addf %14, %17 : vector<32x512xf32>
    %19 = arith.mulf %18, %18 : vector<32x512xf32>
    %cst_13 = arith.constant -9.000000e+02 : f32
    %20 = vector.broadcast %cst_13 : f32 to vector<32x512xf32>
    %21 = arith.mulf %19, %20 : vector<32x512xf32>
    %22 = math.exp %21 : vector<32x512xf32>
    %23 = arith.truncf %22 : vector<32x512xf32> to vector<32x512xbf16>
    %c1_14 = arith.constant 1 : index
    %c0_15 = arith.constant 0 : index
    %c0_16 = arith.constant 0 : index
    %24 = vector.load %arg3[%c1_14, %c0_15, %c0_16] : memref<3x32x32xbf16, #tpu.memory_space<vmem>>, vector<1x32x32xbf16>
    %25 = vector.shape_cast %24 : vector<1x32x32xbf16> to vector<32x32xbf16>
    %cst_17 = arith.constant dense<0.000000e+00> : vector<32x512xf32>
    %26 = tpu.matmul %25, %23, %cst_17 {dimension_numbers = #tpu.dot_dimension_numbers<[1], [0], [0], [1], [0, 0, 1, 1], [], []>} : vector<32x32xbf16>, vector<32x512xbf16>, vector<32x512xf32> -> vector<32x512xf32>
    %c2 = arith.constant 2 : index
    %c0_18 = arith.constant 0 : index
    %c0_19 = arith.constant 0 : index
    %27 = vector.load %arg4[%c2, %c0_18, %c0_19] : memref<4x32x1xf32, #tpu.memory_space<vmem>>, vector<1x32x1xf32>
    %28 = vector.shape_cast %27 : vector<1x32x1xf32> to vector<32x1xf32>
    %29 = vector.broadcast %28 : vector<32x1xf32> to vector<32x512xf32>
    %30 = arith.addf %26, %29 : vector<32x512xf32>
    %31 = arith.mulf %30, %30 : vector<32x512xf32>
    %cst_20 = arith.constant -9.000000e+02 : f32
    %32 = vector.broadcast %cst_20 : f32 to vector<32x512xf32>
    %33 = arith.mulf %31, %32 : vector<32x512xf32>
    %34 = math.exp %33 : vector<32x512xf32>
    %35 = arith.truncf %34 : vector<32x512xf32> to vector<32x512xbf16>
    %c2_21 = arith.constant 2 : index
    %c0_22 = arith.constant 0 : index
    %c0_23 = arith.constant 0 : index
    %36 = vector.load %arg3[%c2_21, %c0_22, %c0_23] : memref<3x32x32xbf16, #tpu.memory_space<vmem>>, vector<1x32x32xbf16>
    %37 = vector.shape_cast %36 : vector<1x32x32xbf16> to vector<32x32xbf16>
    %cst_24 = arith.constant dense<0.000000e+00> : vector<32x512xf32>
    %38 = tpu.matmul %37, %35, %cst_24 {dimension_numbers = #tpu.dot_dimension_numbers<[1], [0], [0], [1], [0, 0, 1, 1], [], []>} : vector<32x32xbf16>, vector<32x512xbf16>, vector<32x512xf32> -> vector<32x512xf32>
    %c3 = arith.constant 3 : index
    %c0_25 = arith.constant 0 : index
    %c0_26 = arith.constant 0 : index
    %39 = vector.load %arg4[%c3, %c0_25, %c0_26] : memref<4x32x1xf32, #tpu.memory_space<vmem>>, vector<1x32x1xf32>
    %40 = vector.shape_cast %39 : vector<1x32x1xf32> to vector<32x1xf32>
    %41 = vector.broadcast %40 : vector<32x1xf32> to vector<32x512xf32>
    %42 = arith.addf %38, %41 : vector<32x512xf32>
    %43 = arith.mulf %42, %42 : vector<32x512xf32>
    %cst_27 = arith.constant -9.000000e+02 : f32
    %44 = vector.broadcast %cst_27 : f32 to vector<32x512xf32>
    %45 = arith.mulf %43, %44 : vector<32x512xf32>
    %46 = math.exp %45 : vector<32x512xf32>
    %47 = arith.truncf %46 : vector<32x512xf32> to vector<32x512xbf16>
    %c0_28 = arith.constant 0 : index
    %c0_29 = arith.constant 0 : index
    %48 = vector.load %arg5[%c0_28, %c0_29] : memref<3x32xbf16, #tpu.memory_space<vmem>>, vector<3x32xbf16>
    %cst_30 = arith.constant dense<0.000000e+00> : vector<3x512xf32>
    %49 = tpu.matmul %48, %47, %cst_30 {dimension_numbers = #tpu.dot_dimension_numbers<[1], [0], [0], [1], [0, 0, 1, 1], [], []>} : vector<3x32xbf16>, vector<32x512xbf16>, vector<3x512xf32> -> vector<3x512xf32>
    %c0_31 = arith.constant 0 : index
    %c0_32 = arith.constant 0 : index
    %50 = vector.load %arg6[%c0_31, %c0_32] : memref<3x512xf32, #tpu.memory_space<vmem>>, vector<3x512xf32>
    tpu.vector_store %arg6[%c0_31, %c0_32], %49 {strides = array<i32>} : memref<3x512xf32, #tpu.memory_space<vmem>>, vector<3x512xf32>,
    return
  }
  func.func @transform_0(%arg0: i32) -> (i32, i32) {
    %c0_i32 = arith.constant 0 : i32
    %c0_i32_0 = arith.constant 0 : i32
    return %c0_i32, %arg0 : i32, i32
  }
  func.func @transform_1(%arg0: i32) -> (i32, i32) {
    %c0_i32 = arith.constant 0 : i32
    %c0_i32_0 = arith.constant 0 : i32
    %c0_i32_1 = arith.constant 0 : i32
    return %c0_i32, %c0_i32_0 : i32, i32
  }
  func.func @transform_2(%arg0: i32) -> (i32, i32, i32) {
    %c0_i32 = arith.constant 0 : i32
    %c0_i32_0 = arith.constant 0 : i32
    %c0_i32_1 = arith.constant 0 : i32
    %c0_i32_2 = arith.constant 0 : i32
    return %c0_i32, %c0_i32_0, %c0_i32_1 : i32, i32, i32
  }
  func.func @transform_3(%arg0: i32) -> (i32, i32, i32) {
    %c0_i32 = arith.constant 0 : i32
    %c0_i32_0 = arith.constant 0 : i32
    %c0_i32_1 = arith.constant 0 : i32
    %c0_i32_2 = arith.constant 0 : i32
    return %c0_i32, %c0_i32_0, %c0_i32_1 : i32, i32, i32
  }
  func.func @transform_4(%arg0: i32) -> (i32, i32) {
    %c0_i32 = arith.constant 0 : i32
    %c0_i32_0 = arith.constant 0 : i32
    %c0_i32_1 = arith.constant 0 : i32
    return %c0_i32, %c0_i32_0 : i32, i32
  }
  func.func @transform_5(%arg0: i32) -> (i32, i32) {
    %c0_i32 = arith.constant 0 : i32
    %c0_i32_0 = arith.constant 0 : i32
    return %c0_i32, %arg0 : i32, i32
  }
}

</mosaic_0001>

<llo_original>
// kernel: tpu_custom_call.1
$region0: #{tpu_custom_call.1}
  #allocation0 [shape = 'u32[]', space=smem, size = 0x4, offset = 0x4, fixed_abs, tag = 'smem constant byte address 0x4 - core index']
  #allocation1 [shape = 'u32[144,128]{1,0:T(1,128)}', space=vmem, size = 0x12000, scoped, tag = 'internal scratch']
  %s0 = inlined_call_operand.vmem [shape: bf16[2,1024], index: 0, kind: input, shape index: {}]
  %s1 = inlined_call_operand.vmem [shape: bf16[32,2], index: 1, kind: input, shape index: {}]
  %s2 = inlined_call_operand.vmem [shape: bf16[3,32,32], index: 2, kind: input, shape index: {}]
  %s3 = inlined_call_operand.vmem [shape: f32[4,32,1], index: 3, kind: input, shape index: {}]
  %s4 = inlined_call_operand.vmem [shape: bf16[3,32], index: 4, kind: input, shape index: {}]
  %s5 = inlined_call_operand.hbm [shape: f32[3,1024], index: 5, kind: output, shape index: {}]
  %s6 = sld [smem:[#allocation0]]
  $region53: #{tpu_custom_call.1} parent=0
    _
  %s8 = ssub.s32 1, %s6
  %s9 = scalar_select 0, %s8, %s6
  $region1: #{tpu_custom_call.1} parent=0
    #allocation2 [shape = 'u8[16384]{0}', space=vmem, size = 0x4000, scoped, tag = 'output window, operand 0']
    #allocation3 [shape = 's32[2]{0}', space=sflag, size = 0x8, scoped, tag = 'scoped memory for tpu_custom_call.1']
    %10 = vsyncpa [#allocation3], 0
    %s11 = scalar_lea.sflag [#allocation3], 1
    %12 = vsyncpa %s11, 0
    loop: start=0, step=1, limit=4
    $region2: #{tpu_custom_call.1} parent=1 // loop_pre_header
      _
    $region3: #{tpu_custom_call.1} parent=1 // loop_header
      %s14 = sphi 0, %s18
      %p15 = scmp.ge.s32.totalorder %s14, 4
      %s24 = sphi 0, %s26
      %s27 = sphi 0, %s24
      %s28 = sphi 0, %s27
      %s44 = sphi 0, %s28
      %s48 = sphi 0, %s48
      %s50 = sphi 0, %s48
      %s51 = sphi 0, %s50
      %s65 = sphi 0, %s51
      %s69 = sphi 0, %s69
      %s71 = sphi 0, %s69
      %s72 = sphi 0, %s71
      %s86 = sphi 0, %s72
      %s90 = sphi 0, %s90
      %s92 = sphi 0, %s90
      %s93 = sphi 0, %s92
      %s107 = sphi 0, %s93
      %s111 = sphi 0, %s111
      %s113 = sphi 0, %s111
      %s114 = sphi 0, %s113
      %s128 = sphi 0, %s114
      %s134 = sphi 0, %s136
      %s137 = sphi 0, %s134
      %s138 = sphi 0, %s137
      %s154 = sphi 0, %s138
    $region4: #{tpu_custom_call.1} parent=1 // loop_header_branch
      %17 = sbr.rel (%p15) target = $region8
    $region5: #{tpu_custom_call.1} parent=1 // loop_body
      %s19 = ssub.s32 %s14, 1
      %s20 = ssub.s32 %s14, 2
      %s21 = sadd.s32 %s14, 1
      %s22 = ssub.s32 %s14, %s21
      %p23 = scmp.eq.s32.totalorder %s22, 0
      %s25 = sadd.s32 %s24, 1
      %s26 = scalar_select %p23, %s24, %s25
      %p29 = pneg %p23
      %p30 = scmp.eq.s32.totalorder %s14, 1
      %p31 = por %p29, %p30
      %p32 = scmp.ne.s32.totalorder %s24, %s27
      %p33 = scmp.eq.s32.totalorder %s14, 0
      %p34 = por %p32, %p33
      %p35 = scmp.ne.s32.totalorder %s24, %s27
      %p36 = scmp.eq.s32.totalorder %s19, 1
      %p37 = por %p35, %p36
      %p38 = scmp.ne.s32.totalorder %s27, %s28
      %p39 = scmp.eq.s32.totalorder %s19, 0
      %p40 = por %p38, %p39
      %p41 = scmp.ne.s32.totalorder %s27, %s28
      %p42 = scmp.eq.s32.totalorder %s20, 1
      %p43 = por %p41, %p42
      %p45 = scmp.ne.s32.totalorder %s28, %s44
      %p46 = scmp.eq.s32.totalorder %s20, 0
      %p47 = por %p45, %p46
      %s49 = sadd.s32 %s48, 1
      %p52 = scmp.eq.s32.totalorder %s14, 1
      %p53 = scmp.ne.s32.totalorder %s48, %s50
      %p54 = scmp.eq.s32.totalorder %s14, 0
      %p55 = por %p53, %p54
      %p56 = scmp.ne.s32.totalorder %s48, %s50
      %p57 = scmp.eq.s32.totalorder %s19, 1
      %p58 = por %p56, %p57
      %p59 = scmp.ne.s32.totalorder %s50, %s51
      %p60 = scmp.eq.s32.totalorder %s19, 0
      %p61 = por %p59, %p60
      %p62 = scmp.ne.s32.totalorder %s50, %s51
      %p63 = scmp.eq.s32.totalorder %s20, 1
      %p64 = por %p62, %p63
      %p66 = scmp.ne.s32.totalorder %s51, %s65
      %p67 = scmp.eq.s32.totalorder %s20, 0
      %p68 = por %p66, %p67
      %s70 = sadd.s32 %s69, 1
      %p73 = scmp.eq.s32.totalorder %s14, 1
      %p74 = scmp.ne.s32.totalorder %s69, %s71
      %p75 = scmp.eq.s32.totalorder %s14, 0
      %p76 = por %p74, %p75
      %p77 = scmp.ne.s32.totalorder %s69, %s71
      %p78 = scmp.eq.s32.totalorder %s19, 1
      %p79 = por %p77, %p78
      %p80 = scmp.ne.s32.totalorder %s71, %s72
      %p81 = scmp.eq.s32.totalorder %s19, 0
      %p82 = por %p80, %p81
      %p83 = scmp.ne.s32.totalorder %s71, %s72
      %p84 = scmp.eq.s32.totalorder %s20, 1
      %p85 = por %p83, %p84
      %p87 = scmp.ne.s32.totalorder %s72, %s86
      %p88 = scmp.eq.s32.totalorder %s20, 0
      %p89 = por %p87, %p88
      %s91 = sadd.s32 %s90, 1
      %p94 = scmp.eq.s32.totalorder %s14, 1
      %p95 = scmp.ne.s32.totalorder %s90, %s92
      %p96 = scmp.eq.s32.totalorder %s14, 0
      %p97 = por %p95, %p96
      %p98 = scmp.ne.s32.totalorder %s90, %s92
      %p99 = scmp.eq.s32.totalorder %s19, 1
      %p100 = por %p98, %p99
      %p101 = scmp.ne.s32.totalorder %s92, %s93
      %p102 = scmp.eq.s32.totalorder %s19, 0
      %p103 = por %p101, %p102
      %p104 = scmp.ne.s32.totalorder %s92, %s93
      %p105 = scmp.eq.s32.totalorder %s20, 1
      %p106 = por %p104, %p105
      %p108 = scmp.ne.s32.totalorder %s93, %s107
      %p109 = scmp.eq.s32.totalorder %s20, 0
      %p110 = por %p108, %p109
      %s112 = sadd.s32 %s111, 1
      %p115 = scmp.eq.s32.totalorder %s14, 1
      %p116 = scmp.ne.s32.totalorder %s111, %s113
      %p117 = scmp.eq.s32.totalorder %s14, 0
      %p118 = por %p116, %p117
      %p119 = scmp.ne.s32.totalorder %s111, %s113
      %p120 = scmp.eq.s32.totalorder %s19, 1
      %p121 = por %p119, %p120
      %p122 = scmp.ne.s32.totalorder %s113, %s114
      %p123 = scmp.eq.s32.totalorder %s19, 0
      %p124 = por %p122, %p123
      %p125 = scmp.ne.s32.totalorder %s113, %s114
      %p126 = scmp.eq.s32.totalorder %s20, 1
      %p127 = por %p125, %p126
      %p129 = scmp.ne.s32.totalorder %s114, %s128
      %p130 = scmp.eq.s32.totalorder %s20, 0
      %p131 = por %p129, %p130
      %s132 = ssub.s32 %s14, %s21
      %p133 = scmp.eq.s32.totalorder %s132, 0
      %s135 = sadd.s32 %s134, 1
      %s136 = scalar_select %p133, %s134, %s135
      %p139 = pneg %p133
      %p140 = scmp.eq.s32.totalorder %s14, 1
      %p141 = por %p139, %p140
      %p142 = scmp.ne.s32.totalorder %s134, %s137
      %p143 = scmp.eq.s32.totalorder %s14, 0
      %p144 = por %p142, %p143
      %p145 = scmp.ne.s32.totalorder %s134, %s137
      %p146 = scmp.eq.s32.totalorder %s19, 1
      %p147 = por %p145, %p146
      %p148 = scmp.ne.s32.totalorder %s137, %s138
      %p149 = scmp.eq.s32.totalorder %s19, 0
      %p150 = por %p148, %p149
      %p151 = scmp.ne.s32.totalorder %s137, %s138
      %p152 = scmp.eq.s32.totalorder %s20, 1
      %p153 = por %p151, %p152
      %p155 = scmp.ne.s32.totalorder %s138, %s154
      %p156 = scmp.eq.s32.totalorder %s20, 0
      %p157 = por %p155, %p156
      %p158 = scmp.le.s32.totalorder 1, %s14
      %p159 = scmp.lt.s32.totalorder %s14, 3
      %p160 = pnand %p158, %p159
      %p161 = pneg %p160
      // Predicated region
      $region9: #{tpu_custom_call.1} parent=5 // pred_check
        _
      $region10: #{tpu_custom_call.1} parent=5 // pred_check_branch
        %163 = sbr.rel (%p160) target = $region12
      $region11: #{tpu_custom_call.1} parent=5 // pred_region
        %s164 = ssub.s32 %s14, 1
        // Predicated region
        $region13: #{tpu_custom_call.1} parent=11 // pred_check
          %p165 = pneg %p61
        $region14: #{tpu_custom_call.1} parent=11 // pred_check_branch
          %167 = sbr.rel (%p165) target = $region16
        $region15: #{tpu_custom_call.1} parent=11 // pred_region
          _
        $region16: #{tpu_custom_call.1} parent=11 // pred_fallthru
          _
        // Predicated region
        $region17: #{tpu_custom_call.1} parent=11 // pred_check
          %p168 = pneg %p82
        $region18: #{tpu_custom_call.1} parent=11 // pred_check_branch
          %170 = sbr.rel (%p168) target = $region20
        $region19: #{tpu_custom_call.1} parent=11 // pred_region
          _
        $region20: #{tpu_custom_call.1} parent=11 // pred_fallthru
          _
        // Predicated region
        $region21: #{tpu_custom_call.1} parent=11 // pred_check
          %p171 = pneg %p103
        $region22: #{tpu_custom_call.1} parent=11 // pred_check_branch
          %173 = sbr.rel (%p171) target = $region24
        $region23: #{tpu_custom_call.1} parent=11 // pred_region
          _
        $region24: #{tpu_custom_call.1} parent=11 // pred_fallthru
          _
        // Predicated region
        $region25: #{tpu_custom_call.1} parent=11 // pred_check
          %p174 = pneg %p124
        $region26: #{tpu_custom_call.1} parent=11 // pred_check_branch
          %176 = sbr.rel (%p174) target = $region28
        $region27: #{tpu_custom_call.1} parent=11 // pred_region
          _
        $region28: #{tpu_custom_call.1} parent=11 // pred_fallthru
          _
      $region12: #{tpu_custom_call.1} parent=5 // pred_fallthru
        _
      %p177 = scmp.lt.s32.totalorder %s14, 2
      // Predicated region
      $region29: #{tpu_custom_call.1} parent=5 // pred_check
        %p178 = pneg %p177
      $region30: #{tpu_custom_call.1} parent=5 // pred_check_branch
        %180 = sbr.rel (%p178) target = $region32
      $region31: #{tpu_custom_call.1} parent=5 // pred_region
        // Predicated region
        $region33: #{tpu_custom_call.1} parent=31 // pred_check
          %p181 = pneg %p34
        $region34: #{tpu_custom_call.1} parent=31 // pred_check_branch
          %183 = sbr.rel (%p181) target = $region36
        $region35: #{tpu_custom_call.1} parent=31 // pred_region
          %s184 = smul.u32 4, %s14
          %p185 = scmp.lt.s32.totalorder %s184, 7
          %s186 = scalar_select %p185, %s184, 7
          %s187 = scalar_lea.vmem %s0, %s186
          %s188 = smul.u32 4, %s14
        $region36: #{tpu_custom_call.1} parent=31 // pred_fallthru
          _
      $region32: #{tpu_custom_call.1} parent=5 // pred_fallthru
        _
      %p189 = scmp.le.s32.totalorder 1, %s14
      %p190 = scmp.lt.s32.totalorder %s14, 3
      %p191 = pnand %p189, %p190
      %p192 = pneg %p191
      // Predicated region
      $region37: #{tpu_custom_call.1} parent=5 // pred_check
        _
      $region38: #{tpu_custom_call.1} parent=5 // pred_check_branch
        %194 = sbr.rel (%p191) target = $region40
      $region39: #{tpu_custom_call.1} parent=5 // pred_region
        %s195 = ssub.s32 %s14, 1
        %s196 = smul.u32 4, %s19
        %p197 = scmp.lt.s32.totalorder %s196, 7
        %s198 = scalar_select %p197, %s196, 7
        %s199 = scalar_lea.vmem %s0, %s198
        %p200 = pneg %p40
        %p201 = pneg %p37
        %p202 = pneg %p61
        %p203 = pneg %p58
        %p204 = pneg %p82
        %p205 = pneg %p79
        %p206 = pneg %p103
        %p207 = pneg %p100
        %p208 = pneg %p124
        %p209 = pneg %p121
        %p210 = pneg %p150
        %p211 = pneg %p147
        %s212 = sand.u32 %s137, 1
        %s213 = scalar_lea.sflag [#allocation3], %s212
        %s214 = sand.u32 %s137, 1
        %s215 = smul.addr %s214, 16
        %s216 = scalar_lea.vmem [#allocation2], %s215
        %s217 = smul.u32 4, %s19
        %p218 = scmp.lt.s32.totalorder %s217, 7
        %s219 = scalar_select %p218, %s217, 7
        %s220 = scalar_lea.vmem %s0, %s219
        %s221 = smul.u32 4, %s19
        %s222 = smul.u32 4, %s19
        %v224 = vld [vmem:[%s220] sm:$0xf]
        %v225 = vld [vmem:[%s1] sm:$0xf]
        %v226 = vld [vmem:[%s1 + $0x4] sm:$0xf]
        %v227 = vld [vmem:[%s1 + $0x8] sm:$0xf]
        %v228 = vld [vmem:[%s1 + $0xc] sm:$0xf]
        %v229 = vld [vmem:[%s3] sm:$0xff]
        %v230 = vld [vmem:[%s3 + $0x8] sm:$0xff]
        %v231 = vld [vmem:[%s3 + $0x10] sm:$0xff]
        %v232 = vld [vmem:[%s3 + $0x18] sm:$0xff]
        %234 = vset.pattern.permute.xlu0 0
        %235 = vperm.xlu0 %234, %v229
        %v236 = vpop.permute.xlu0 %235
        %239 = vset.pattern.permute.xlu0 0
        %240 = vperm.xlu0 %239, %v230
        %v241 = vpop.permute.xlu0 %240
        %244 = vset.pattern.permute.xlu0 0
        %245 = vperm.xlu0 %244, %v231
        %v246 = vpop.permute.xlu0 %245
        %249 = vset.pattern.permute.xlu0 0
        %250 = vperm.xlu0 %249, %v232
        %v251 = vpop.permute.xlu0 %250
        %v257 = vunpack.c.l.b16 %v225
        %v258 = vunpack.c.l.b16 %v226
        %v259 = vunpack.c.l.b16 %v227
        %v260 = vunpack.c.l.b16 %v228
        %v261 = vpack.c.b16 %v258, %v257
        %v262 = vpack.c.b16 %v260, %v259
        %v265 = vunpack.c.l.s4 1966171168
        %v266 = vunpack.c.0.s8 %v265
        %v267 = vlaneseq
        %v268 = vshrl.u32 %v267, 7
        %v269 = vsub.s32 %v266, %v268
        %v270 = vrot.slane %v224, %v269
        %v271 = vcombine.high %v270, %v270
        %v273 = vunpack.c.l.s4 1966171168
        %v274 = vunpack.c.0.s8 %v273
        %v275 = vlaneseq
        %v276 = vshrl.u32 %v275, 7
        %v277 = vsub.s32 %v274, %v276
        %v278 = vrot.slane %v270, %v277
        %v280 = vunpack.c.l.s4 1966171168
        %v281 = vunpack.c.0.s8 %v280
        %v282 = vlaneseq
        %v283 = vshrl.u32 %v282, 7
        %v284 = vsub.s32 %v281, %v283
        %v285 = vrot.slane %v271, %v284
        %v286 = vcombine.high %v278, %v278
        %v287 = vcombine.high %v285, %v285
        %vm288 = vcmask 15360
        %v290 = vsel %vm288, %v261, 0
        %v293 = vsel %vm288, %v262, 0
        %vm295 = vcmask 1040384
        %v297 = vsel %vm295, %v278, 0
        %v300 = vsel %vm295, %v285, 0
        %v303 = vsel %vm295, %v286, 0
        %v306 = vsel %vm295, %v287, 0
        %308 = vmatprep.subr.bf16.mxu0 %v300
        %309 = vmatpush1.bf16.msra.mxu0 %v297
        %310 = vmatprep.subr.bf16.mxu0 0
        %311 = vmatpush1.bf16.msra.mxu0 0
        %312 = vmatprep.subr.bf16.mxu0 0
        %313 = vmatpush1.bf16.msra.mxu0 0
        %314 = vmatprep.subr.bf16.mxu0 0
        %315 = vmatpush1.bf16.msra.mxu0 0
        %316 = vmatprep.subr.bf16.mxu0 0
        %317 = vmatpush1.bf16.msra.mxu0 0
        %318 = vmatprep.subr.bf16.mxu0 0
        %319 = vmatpush1.bf16.msra.mxu0 0
        %320 = vmatprep.subr.bf16.mxu0 0
        %321 = vmatpush1.bf16.msra.mxu0 0
        %322 = vmatprep.subr.bf16.mxu0 0
        %323 = vmatpush1.bf16.msra.mxu0 0
        %324 = vmatprep.subr.bf16.mxu0 0
        %325 = vmatpush1.bf16.msra.mxu0 0
        %326 = vmatprep.subr.bf16.mxu0 0
        %327 = vmatpush1.bf16.msra.mxu0 0
        %328 = vmatprep.subr.bf16.mxu0 0
        %329 = vmatpush1.bf16.msra.mxu0 0
        %330 = vmatprep.subr.bf16.mxu0 0
        %331 = vmatpush1.bf16.msra.mxu0 0
        %332 = vmatprep.subr.bf16.mxu0 0
        %333 = vmatpush1.bf16.msra.mxu0 0
        %334 = vmatprep.subr.bf16.mxu0 0
        %335 = vmatpush1.bf16.msra.mxu0 0
        %336 = vmatprep.subr.bf16.mxu0 0
        %337 = vmatpush1.bf16.msra.mxu0 0
        %338 = vmatprep.subr.bf16.mxu0 0
        %339 = vmatpush1.bf16.msra.mxu0 0
        %340 = vmatprep.mubr.bf16.mxu0 0
        %341 = vmatmul.mubr.bf16.gmra.mrb[0].mxu0 %v290
        %v342 = vpop.f32.mrb[0].mxu0
        %v343 = vadd.f32 %v236, %v342
        %v344 = vpop.f32.mrb[0].mxu0
        %v345 = vadd.f32 %v236, %v344
        %v346 = vpop.f32.mrb[0].mxu0
        %v347 = vadd.f32 %v241, %v346
        %v348 = vpop.f32.mrb[0].mxu0
        %v349 = vadd.f32 %v241, %v348
        %350 = vmatprep.mubr.bf16.mxu0 0
        %351 = vmatmul.mubr.bf16.gmra.mrb[0].mxu0 %v293
        %v352 = vpop.f32.mrb[0].mxu0
        %v353 = vadd.f32 %v246, %v352
        %v354 = vpop.f32.mrb[0].mxu0
        %v355 = vadd.f32 %v246, %v354
        %v356 = vpop.f32.mrb[0].mxu0
        %v357 = vadd.f32 %v251, %v356
        %v358 = vpop.f32.mrb[0].mxu0
        %v359 = vadd.f32 %v251, %v358
        %360 = vdwg.mxu0
        %361 = vmatprep.subr.bf16.mxu0 %v306
        %362 = vmatpush1.bf16.msra.mxu0 %v303
        %363 = vmatprep.subr.bf16.mxu0 0
        %364 = vmatpush1.bf16.msra.mxu0 0
        %365 = vmatprep.subr.bf16.mxu0 0
        %366 = vmatpush1.bf16.msra.mxu0 0
        %367 = vmatprep.subr.bf16.mxu0 0
        %368 = vmatpush1.bf16.msra.mxu0 0
        %369 = vmatprep.subr.bf16.mxu0 0
        %370 = vmatpush1.bf16.msra.mxu0 0
        %371 = vmatprep.subr.bf16.mxu0 0
        %372 = vmatpush1.bf16.msra.mxu0 0
        %373 = vmatprep.subr.bf16.mxu0 0
        %374 = vmatpush1.bf16.msra.mxu0 0
        %375 = vmatprep.subr.bf16.mxu0 0
        %376 = vmatpush1.bf16.msra.mxu0 0
        %377 = vmatprep.subr.bf16.mxu0 0
        %378 = vmatpush1.bf16.msra.mxu0 0
        %379 = vmatprep.subr.bf16.mxu0 0
        %380 = vmatpush1.bf16.msra.mxu0 0
        %381 = vmatprep.subr.bf16.mxu0 0
        %382 = vmatpush1.bf16.msra.mxu0 0
        %383 = vmatprep.subr.bf16.mxu0 0
        %384 = vmatpush1.bf16.msra.mxu0 0
        %385 = vmatprep.subr.bf16.mxu0 0
        %386 = vmatpush1.bf16.msra.mxu0 0
        %387 = vmatprep.subr.bf16.mxu0 0
        %388 = vmatpush1.bf16.msra.mxu0 0
        %389 = vmatprep.subr.bf16.mxu0 0
        %390 = vmatpush1.bf16.msra.mxu0 0
        %391 = vmatprep.subr.bf16.mxu0 0
        %392 = vmatpush1.bf16.msra.mxu0 0
        %393 = vmatprep.mubr.bf16.mxu0 0
        %394 = vmatmul.mubr.bf16.gmra.mrb[0].mxu0 %v290
        %v395 = vpop.f32.mrb[0].mxu0
        %v396 = vadd.f32 %v236, %v395
        %v397 = vpop.f32.mrb[0].mxu0
        %v398 = vadd.f32 %v236, %v397
        %v399 = vpop.f32.mrb[0].mxu0
        %v400 = vadd.f32 %v241, %v399
        %v401 = vpop.f32.mrb[0].mxu0
        %v402 = vadd.f32 %v241, %v401
        %403 = vmatprep.mubr.bf16.mxu0 0
        %404 = vmatmul.mubr.bf16.gmra.mrb[0].mxu0 %v293
        %v405 = vpop.f32.mrb[0].mxu0
        %v406 = vadd.f32 %v246, %v405
        %v407 = vpop.f32.mrb[0].mxu0
        %v408 = vadd.f32 %v246, %v407
        %v409 = vpop.f32.mrb[0].mxu0
        %v410 = vadd.f32 %v251, %v409
        %v411 = vpop.f32.mrb[0].mxu0
        %v412 = vadd.f32 %v251, %v411
        %413 = vdwg.mxu0
        %v414 = vmul.f32 %v343, %v343
        %v415 = vmul.f32 %v345, %v345
        %v416 = vmul.f32 %v396, %v396
        %v417 = vmul.f32 %v398, %v398
        %v418 = vmul.f32 %v347, %v347
        %v419 = vmul.f32 %v349, %v349
        %v420 = vmul.f32 %v400, %v400
        %v421 = vmul.f32 %v402, %v402
        %v422 = vmul.f32 %v353, %v353
        %v423 = vmul.f32 %v355, %v355
        %v424 = vmul.f32 %v406, %v406
        %v425 = vmul.f32 %v408, %v408
        %v426 = vmul.f32 %v357, %v357
        %v427 = vmul.f32 %v359, %v359
        %v428 = vmul.f32 %v410, %v410
        %v429 = vmul.f32 %v412, %v412
        %v430 = vmul.f32 %v414, -900.0
        %v431 = vmul.f32 %v415, -900.0
        %v432 = vmul.f32 %v416, -900.0
        %v433 = vmul.f32 %v417, -900.0
        %v434 = vmul.f32 %v418, -900.0
        %v435 = vmul.f32 %v419, -900.0
        %v436 = vmul.f32 %v420, -900.0
        %v437 = vmul.f32 %v421, -900.0
        %v438 = vmul.f32 %v422, -900.0
        %v439 = vmul.f32 %v423, -900.0
        %v440 = vmul.f32 %v424, -900.0
        %v441 = vmul.f32 %v425, -900.0
        %v442 = vmul.f32 %v426, -900.0
        %v443 = vmul.f32 %v427, -900.0
        %v444 = vmul.f32 %v428, -900.0
        %v445 = vmul.f32 %v429, -900.0
        %v446 = vmul.f32 %v430, 1.442695
        %v447 = vpow.pop %v446
        %v448 = vmul.f32 %v431, 1.442695
        %v449 = vpow.pop %v448
        %v450 = vmul.f32 %v432, 1.442695
        %v451 = vpow.pop %v450
        %v452 = vmul.f32 %v433, 1.442695
        %v453 = vpow.pop %v452
        %v454 = vmul.f32 %v434, 1.442695
        %v455 = vpow.pop %v454
        %v456 = vmul.f32 %v435, 1.442695
        %v457 = vpow.pop %v456
        %v458 = vmul.f32 %v436, 1.442695
        %v459 = vpow.pop %v458
        %v460 = vmul.f32 %v437, 1.442695
        %v461 = vpow.pop %v460
        %v462 = vmul.f32 %v438, 1.442695
        %v463 = vpow.pop %v462
        %v464 = vmul.f32 %v439, 1.442695
        %v465 = vpow.pop %v464
        %v466 = vmul.f32 %v440, 1.442695
        %v467 = vpow.pop %v466
        %v468 = vmul.f32 %v441, 1.442695
        %v469 = vpow.pop %v468
        %v470 = vmul.f32 %v442, 1.442695
        %v471 = vpow.pop %v470
        %v472 = vmul.f32 %v443, 1.442695
        %v473 = vpow.pop %v472
        %v474 = vmul.f32 %v444, 1.442695
        %v475 = vpow.pop %v474
        %v476 = vmul.f32 %v445, 1.442695
        %v477 = vpow.pop %v476
        %v478 = vpack.c.bf16 %v455, %v447
        %v479 = vpack.c.bf16 %v457, %v449
        %v480 = vpack.c.bf16 %v459, %v451
        %v481 = vpack.c.bf16 %v461, %v453
        %v482 = vpack.c.bf16 %v471, %v463
        %v483 = vpack.c.bf16 %v473, %v465
        %v484 = vpack.c.bf16 %v475, %v467
        %v485 = vpack.c.bf16 %v477, %v469
        %v486 = vld [vmem:[%s2] sm:$0xf]
        %v487 = vld [vmem:[%s2 + $0x4] sm:$0xf]
        %v488 = vld [vmem:[%s2 + $0x8] sm:$0xf]
        %v489 = vld [vmem:[%s2 + $0xc] sm:$0xf]
        %s490 = scalar_lea.vmem %s3, 32
        %v491 = vld [vmem:[%s490] sm:$0xff]
        %v492 = vld [vmem:[%s490 + $0x8] sm:$0xff]
        %v493 = vld [vmem:[%s490 + $0x10] sm:$0xff]
        %v494 = vld [vmem:[%s490 + $0x18] sm:$0xff]
        %496 = vset.pattern.permute.xlu0 0
        %497 = vperm.xlu0 %496, %v491
        %v498 = vpop.permute.xlu0 %497
        %501 = vset.pattern.permute.xlu0 0
        %502 = vperm.xlu0 %501, %v492
        %v503 = vpop.permute.xlu0 %502
        %506 = vset.pattern.permute.xlu0 0
        %507 = vperm.xlu0 %506, %v493
        %v508 = vpop.permute.xlu0 %507
        %511 = vset.pattern.permute.xlu0 0
        %512 = vperm.xlu0 %511, %v494
        %v513 = vpop.permute.xlu0 %512
        %v519 = vunpack.c.l.b16 %v486
        %v520 = vunpack.c.l.b16 %v487
        %v521 = vunpack.c.l.b16 %v488
        %v522 = vunpack.c.l.b16 %v489
        %v523 = vpack.c.b16 %v520, %v519
        %v524 = vpack.c.b16 %v522, %v521
        %vm525 = vcmask 261120
        %v527 = vsel %vm525, %v523, 0
        %v530 = vsel %vm525, %v524, 0
        %532 = vmatprep.subr.bf16.mxu0 %v479
        %533 = vmatpush1.bf16.msra.mxu0 %v478
        %534 = vmatprep.subr.bf16.mxu0 %v483
        %535 = vmatpush1.bf16.msra.mxu0 %v482
        %536 = vmatprep.subr.bf16.mxu0 0
        %537 = vmatpush1.bf16.msra.mxu0 0
        %538 = vmatprep.subr.bf16.mxu0 0
        %539 = vmatpush1.bf16.msra.mxu0 0
        %540 = vmatprep.subr.bf16.mxu0 0
        %541 = vmatpush1.bf16.msra.mxu0 0
        %542 = vmatprep.subr.bf16.mxu0 0
        %543 = vmatpush1.bf16.msra.mxu0 0
        %544 = vmatprep.subr.bf16.mxu0 0
        %545 = vmatpush1.bf16.msra.mxu0 0
        %546 = vmatprep.subr.bf16.mxu0 0
        %547 = vmatpush1.bf16.msra.mxu0 0
        %548 = vmatprep.subr.bf16.mxu0 0
        %549 = vmatpush1.bf16.msra.mxu0 0
        %550 = vmatprep.subr.bf16.mxu0 0
        %551 = vmatpush1.bf16.msra.mxu0 0
        %552 = vmatprep.subr.bf16.mxu0 0
        %553 = vmatpush1.bf16.msra.mxu0 0
        %554 = vmatprep.subr.bf16.mxu0 0
        %555 = vmatpush1.bf16.msra.mxu0 0
        %556 = vmatprep.subr.bf16.mxu0 0
        %557 = vmatpush1.bf16.msra.mxu0 0
        %558 = vmatprep.subr.bf16.mxu0 0
        %559 = vmatpush1.bf16.msra.mxu0 0
        %560 = vmatprep.subr.bf16.mxu0 0
        %561 = vmatpush1.bf16.msra.mxu0 0
        %562 = vmatprep.subr.bf16.mxu0 0
        %563 = vmatpush1.bf16.msra.mxu0 0
        %564 = vmatprep.mubr.bf16.mxu0 0
        %565 = vmatmul.mubr.bf16.gmra.mrb[0].mxu0 %v527
        %v566 = vpop.f32.mrb[0].mxu0
        %v567 = vadd.f32 %v498, %v566
        %v568 = vpop.f32.mrb[0].mxu0
        %v569 = vadd.f32 %v498, %v568
        %v570 = vpop.f32.mrb[0].mxu0
        %v571 = vadd.f32 %v503, %v570
        %v572 = vpop.f32.mrb[0].mxu0
        %v573 = vadd.f32 %v503, %v572
        %574 = vmatprep.mubr.bf16.mxu0 0
        %575 = vmatmul.mubr.bf16.gmra.mrb[0].mxu0 %v530
        %v576 = vpop.f32.mrb[0].mxu0
        %v577 = vadd.f32 %v508, %v576
        %v578 = vpop.f32.mrb[0].mxu0
        %v579 = vadd.f32 %v508, %v578
        %v580 = vpop.f32.mrb[0].mxu0
        %v581 = vadd.f32 %v513, %v580
        %v582 = vpop.f32.mrb[0].mxu0
        %v583 = vadd.f32 %v513, %v582
        %584 = vdwg.mxu0
        %585 = vmatprep.subr.bf16.mxu0 %v481
        %586 = vmatpush1.bf16.msra.mxu0 %v480
        %587 = vmatprep.subr.bf16.mxu0 %v485
        %588 = vmatpush1.bf16.msra.mxu0 %v484
        %589 = vmatprep.subr.bf16.mxu0 0
        %590 = vmatpush1.bf16.msra.mxu0 0
        %591 = vmatprep.subr.bf16.mxu0 0
        %592 = vmatpush1.bf16.msra.mxu0 0
        %593 = vmatprep.subr.bf16.mxu0 0
        %594 = vmatpush1.bf16.msra.mxu0 0
        %595 = vmatprep.subr.bf16.mxu0 0
        %596 = vmatpush1.bf16.msra.mxu0 0
        %597 = vmatprep.subr.bf16.mxu0 0
        %598 = vmatpush1.bf16.msra.mxu0 0
        %599 = vmatprep.subr.bf16.mxu0 0
        %600 = vmatpush1.bf16.msra.mxu0 0
        %601 = vmatprep.subr.bf16.mxu0 0
        %602 = vmatpush1.bf16.msra.mxu0 0
        %603 = vmatprep.subr.bf16.mxu0 0
        %604 = vmatpush1.bf16.msra.mxu0 0
        %605 = vmatprep.subr.bf16.mxu0 0
        %606 = vmatpush1.bf16.msra.mxu0 0
        %607 = vmatprep.subr.bf16.mxu0 0
        %608 = vmatpush1.bf16.msra.mxu0 0
        %609 = vmatprep.subr.bf16.mxu0 0
        %610 = vmatpush1.bf16.msra.mxu0 0
        %611 = vmatprep.subr.bf16.mxu0 0
        %612 = vmatpush1.bf16.msra.mxu0 0
        %613 = vmatprep.subr.bf16.mxu0 0
        %614 = vmatpush1.bf16.msra.mxu0 0
        %615 = vmatprep.subr.bf16.mxu0 0
        %616 = vmatpush1.bf16.msra.mxu0 0
        %617 = vmatprep.mubr.bf16.mxu0 0
        %618 = vmatmul.mubr.bf16.gmra.mrb[0].mxu0 %v527
        %v619 = vpop.f32.mrb[0].mxu0
        %v620 = vadd.f32 %v498, %v619
        %v621 = vpop.f32.mrb[0].mxu0
        %v622 = vadd.f32 %v498, %v621
        %v623 = vpop.f32.mrb[0].mxu0
        %v624 = vadd.f32 %v503, %v623
        %v625 = vpop.f32.mrb[0].mxu0
        %v626 = vadd.f32 %v503, %v625
        %627 = vmatprep.mubr.bf16.mxu0 0
        %628 = vmatmul.mubr.bf16.gmra.mrb[0].mxu0 %v530
        %v629 = vpop.f32.mrb[0].mxu0
        %v630 = vadd.f32 %v508, %v629
        %v631 = vpop.f32.mrb[0].mxu0
        %v632 = vadd.f32 %v508, %v631
        %v633 = vpop.f32.mrb[0].mxu0
        %v634 = vadd.f32 %v513, %v633
        %v635 = vpop.f32.mrb[0].mxu0
        %v636 = vadd.f32 %v513, %v635
        %637 = vdwg.mxu0
        %v638 = vmul.f32 %v567, %v567
        %v639 = vmul.f32 %v569, %v569
        %v640 = vmul.f32 %v620, %v620
        %v641 = vmul.f32 %v622, %v622
        %v642 = vmul.f32 %v571, %v571
        %v643 = vmul.f32 %v573, %v573
        %v644 = vmul.f32 %v624, %v624
        %v645 = vmul.f32 %v626, %v626
        %v646 = vmul.f32 %v577, %v577
        %v647 = vmul.f32 %v579, %v579
        %v648 = vmul.f32 %v630, %v630
        %v649 = vmul.f32 %v632, %v632
        %v650 = vmul.f32 %v581, %v581
        %v651 = vmul.f32 %v583, %v583
        %v652 = vmul.f32 %v634, %v634
        %v653 = vmul.f32 %v636, %v636
        %v654 = vmul.f32 %v638, -900.0
        %v655 = vmul.f32 %v639, -900.0
        %v656 = vmul.f32 %v640, -900.0
        %v657 = vmul.f32 %v641, -900.0
        %v658 = vmul.f32 %v642, -900.0
        %v659 = vmul.f32 %v643, -900.0
        %v660 = vmul.f32 %v644, -900.0
        %v661 = vmul.f32 %v645, -900.0
        %v662 = vmul.f32 %v646, -900.0
        %v663 = vmul.f32 %v647, -900.0
        %v664 = vmul.f32 %v648, -900.0
        %v665 = vmul.f32 %v649, -900.0
        %v666 = vmul.f32 %v650, -900.0
        %v667 = vmul.f32 %v651, -900.0
        %v668 = vmul.f32 %v652, -900.0
        %v669 = vmul.f32 %v653, -900.0
        %v670 = vmul.f32 %v654, 1.442695
        %v671 = vpow.pop %v670
        %v672 = vmul.f32 %v655, 1.442695
        %v673 = vpow.pop %v672
        %v674 = vmul.f32 %v656, 1.442695
        %v675 = vpow.pop %v674
        %v676 = vmul.f32 %v657, 1.442695
        %v677 = vpow.pop %v676
        %v678 = vmul.f32 %v658, 1.442695
        %v679 = vpow.pop %v678
        %v680 = vmul.f32 %v659, 1.442695
        %v681 = vpow.pop %v680
        %v682 = vmul.f32 %v660, 1.442695
        %v683 = vpow.pop %v682
        %v684 = vmul.f32 %v661, 1.442695
        %v685 = vpow.pop %v684
        %v686 = vmul.f32 %v662, 1.442695
        %v687 = vpow.pop %v686
        %v688 = vmul.f32 %v663, 1.442695
        %v689 = vpow.pop %v688
        %v690 = vmul.f32 %v664, 1.442695
        %v691 = vpow.pop %v690
        %v692 = vmul.f32 %v665, 1.442695
        %v693 = vpow.pop %v692
        %v694 = vmul.f32 %v666, 1.442695
        %v695 = vpow.pop %v694
        %v696 = vmul.f32 %v667, 1.442695
        %v697 = vpow.pop %v696
        %v698 = vmul.f32 %v668, 1.442695
        %v699 = vpow.pop %v698
        %v700 = vmul.f32 %v669, 1.442695
        %v701 = vpow.pop %v700
        %v702 = vpack.c.bf16 %v679, %v671
        %v703 = vpack.c.bf16 %v681, %v673
        %v704 = vpack.c.bf16 %v683, %v675
        %v705 = vpack.c.bf16 %v685, %v677
        %v706 = vpack.c.bf16 %v695, %v687
        %v707 = vpack.c.bf16 %v697, %v689
        %v708 = vpack.c.bf16 %v699, %v691
        %v709 = vpack.c.bf16 %v701, %v693
        %s710 = scalar_lea.vmem %s2, 16
        %v711 = vld [vmem:[%s710] sm:$0xf]
        %v712 = vld [vmem:[%s710 + $0x4] sm:$0xf]
        %v713 = vld [vmem:[%s710 + $0x8] sm:$0xf]
        %v714 = vld [vmem:[%s710 + $0xc] sm:$0xf]
        %s715 = scalar_lea.vmem %s3, 64
        %v716 = vld [vmem:[%s715] sm:$0xff]
        %v717 = vld [vmem:[%s715 + $0x8] sm:$0xff]
        %v718 = vld [vmem:[%s715 + $0x10] sm:$0xff]
        %v719 = vld [vmem:[%s715 + $0x18] sm:$0xff]
        %721 = vset.pattern.permute.xlu0 0
        %722 = vperm.xlu0 %721, %v716
        %v723 = vpop.permute.xlu0 %722
        %726 = vset.pattern.permute.xlu0 0
        %727 = vperm.xlu0 %726, %v717
        %v728 = vpop.permute.xlu0 %727
        %731 = vset.pattern.permute.xlu0 0
        %732 = vperm.xlu0 %731, %v718
        %v733 = vpop.permute.xlu0 %732
        %736 = vset.pattern.permute.xlu0 0
        %737 = vperm.xlu0 %736, %v719
        %v738 = vpop.permute.xlu0 %737
        %v744 = vunpack.c.l.b16 %v711
        %v745 = vunpack.c.l.b16 %v712
        %v746 = vunpack.c.l.b16 %v713
        %v747 = vunpack.c.l.b16 %v714
        %v748 = vpack.c.b16 %v745, %v744
        %v749 = vpack.c.b16 %v747, %v746
        %v751 = vsel %vm525, %v748, 0
        %v754 = vsel %vm525, %v749, 0
        %756 = vmatprep.subr.bf16.mxu0 %v703
        %757 = vmatpush1.bf16.msra.mxu0 %v702
        %758 = vmatprep.subr.bf16.mxu0 %v707
        %759 = vmatpush1.bf16.msra.mxu0 %v706
        %760 = vmatprep.subr.bf16.mxu0 0
        %761 = vmatpush1.bf16.msra.mxu0 0
        %762 = vmatprep.subr.bf16.mxu0 0
        %763 = vmatpush1.bf16.msra.mxu0 0
        %764 = vmatprep.subr.bf16.mxu0 0
        %765 = vmatpush1.bf16.msra.mxu0 0
        %766 = vmatprep.subr.bf16.mxu0 0
        %767 = vmatpush1.bf16.msra.mxu0 0
        %768 = vmatprep.subr.bf16.mxu0 0
        %769 = vmatpush1.bf16.msra.mxu0 0
        %770 = vmatprep.subr.bf16.mxu0 0
        %771 = vmatpush1.bf16.msra.mxu0 0
        %772 = vmatprep.subr.bf16.mxu0 0
        %773 = vmatpush1.bf16.msra.mxu0 0
        %774 = vmatprep.subr.bf16.mxu0 0
        %775 = vmatpush1.bf16.msra.mxu0 0
        %776 = vmatprep.subr.bf16.mxu0 0
        %777 = vmatpush1.bf16.msra.mxu0 0
        %778 = vmatprep.subr.bf16.mxu0 0
        %779 = vmatpush1.bf16.msra.mxu0 0
        %780 = vmatprep.subr.bf16.mxu0 0
        %781 = vmatpush1.bf16.msra.mxu0 0
        %782 = vmatprep.subr.bf16.mxu0 0
        %783 = vmatpush1.bf16.msra.mxu0 0
        %784 = vmatprep.subr.bf16.mxu0 0
        %785 = vmatpush1.bf16.msra.mxu0 0
        %786 = vmatprep.subr.bf16.mxu0 0
        %787 = vmatpush1.bf16.msra.mxu0 0
        %788 = vmatprep.mubr.bf16.mxu0 0
        %789 = vmatmul.mubr.bf16.gmra.mrb[0].mxu0 %v751
        %v790 = vpop.f32.mrb[0].mxu0
        %v791 = vadd.f32 %v723, %v790
        %v792 = vpop.f32.mrb[0].mxu0
        %v793 = vadd.f32 %v723, %v792
        %v794 = vpop.f32.mrb[0].mxu0
        %v795 = vadd.f32 %v728, %v794
        %v796 = vpop.f32.mrb[0].mxu0
        %v797 = vadd.f32 %v728, %v796
        %798 = vmatprep.mubr.bf16.mxu0 0
        %799 = vmatmul.mubr.bf16.gmra.mrb[0].mxu0 %v754
        %v800 = vpop.f32.mrb[0].mxu0
        %v801 = vadd.f32 %v733, %v800
        %v802 = vpop.f32.mrb[0].mxu0
        %v803 = vadd.f32 %v733, %v802
        %v804 = vpop.f32.mrb[0].mxu0
        %v805 = vadd.f32 %v738, %v804
        %v806 = vpop.f32.mrb[0].mxu0
        %v807 = vadd.f32 %v738, %v806
        %808 = vdwg.mxu0
        %809 = vmatprep.subr.bf16.mxu0 %v705
        %810 = vmatpush1.bf16.msra.mxu0 %v704
        %811 = vmatprep.subr.bf16.mxu0 %v709
        %812 = vmatpush1.bf16.msra.mxu0 %v708
        %813 = vmatprep.subr.bf16.mxu0 0
        %814 = vmatpush1.bf16.msra.mxu0 0
        %815 = vmatprep.subr.bf16.mxu0 0
        %816 = vmatpush1.bf16.msra.mxu0 0
        %817 = vmatprep.subr.bf16.mxu0 0
        %818 = vmatpush1.bf16.msra.mxu0 0
        %819 = vmatprep.subr.bf16.mxu0 0
        %820 = vmatpush1.bf16.msra.mxu0 0
        %821 = vmatprep.subr.bf16.mxu0 0
        %822 = vmatpush1.bf16.msra.mxu0 0
        %823 = vmatprep.subr.bf16.mxu0 0
        %824 = vmatpush1.bf16.msra.mxu0 0
        %825 = vmatprep.subr.bf16.mxu0 0
        %826 = vmatpush1.bf16.msra.mxu0 0
        %827 = vmatprep.subr.bf16.mxu0 0
        %828 = vmatpush1.bf16.msra.mxu0 0
        %829 = vmatprep.subr.bf16.mxu0 0
        %830 = vmatpush1.bf16.msra.mxu0 0
        %831 = vmatprep.subr.bf16.mxu0 0
        %832 = vmatpush1.bf16.msra.mxu0 0
        %833 = vmatprep.subr.bf16.mxu0 0
        %834 = vmatpush1.bf16.msra.mxu0 0
        %835 = vmatprep.subr.bf16.mxu0 0
        %836 = vmatpush1.bf16.msra.mxu0 0
        %837 = vmatprep.subr.bf16.mxu0 0
        %838 = vmatpush1.bf16.msra.mxu0 0
        %839 = vmatprep.subr.bf16.mxu0 0
        %840 = vmatpush1.bf16.msra.mxu0 0
        %841 = vmatprep.mubr.bf16.mxu0 0
        %842 = vmatmul.mubr.bf16.gmra.mrb[0].mxu0 %v751
        %v843 = vpop.f32.mrb[0].mxu0
        %v844 = vadd.f32 %v723, %v843
        %v845 = vpop.f32.mrb[0].mxu0
        %v846 = vadd.f32 %v723, %v845
        %v847 = vpop.f32.mrb[0].mxu0
        %v848 = vadd.f32 %v728, %v847
        %v849 = vpop.f32.mrb[0].mxu0
        %v850 = vadd.f32 %v728, %v849
        %851 = vmatprep.mubr.bf16.mxu0 0
        %852 = vmatmul.mubr.bf16.gmra.mrb[0].mxu0 %v754
        %v853 = vpop.f32.mrb[0].mxu0
        %v854 = vadd.f32 %v733, %v853
        %v855 = vpop.f32.mrb[0].mxu0
        %v856 = vadd.f32 %v733, %v855
        %v857 = vpop.f32.mrb[0].mxu0
        %v858 = vadd.f32 %v738, %v857
        %v859 = vpop.f32.mrb[0].mxu0
        %v860 = vadd.f32 %v738, %v859
        %861 = vdwg.mxu0
        %v862 = vmul.f32 %v791, %v791
        %v863 = vmul.f32 %v793, %v793
        %v864 = vmul.f32 %v844, %v844
        %v865 = vmul.f32 %v846, %v846
        %v866 = vmul.f32 %v795, %v795
        %v867 = vmul.f32 %v797, %v797
        %v868 = vmul.f32 %v848, %v848
        %v869 = vmul.f32 %v850, %v850
        %v870 = vmul.f32 %v801, %v801
        %v871 = vmul.f32 %v803, %v803
        %v872 = vmul.f32 %v854, %v854
        %v873 = vmul.f32 %v856, %v856
        %v874 = vmul.f32 %v805, %v805
        %v875 = vmul.f32 %v807, %v807
        %v876 = vmul.f32 %v858, %v858
        %v877 = vmul.f32 %v860, %v860
        %v878 = vmul.f32 %v862, -900.0
        %v879 = vmul.f32 %v863, -900.0
        %v880 = vmul.f32 %v864, -900.0
        %v881 = vmul.f32 %v865, -900.0
        %v882 = vmul.f32 %v866, -900.0
        %v883 = vmul.f32 %v867, -900.0
        %v884 = vmul.f32 %v868, -900.0
        %v885 = vmul.f32 %v869, -900.0
        %v886 = vmul.f32 %v870, -900.0
        %v887 = vmul.f32 %v871, -900.0
        %v888 = vmul.f32 %v872, -900.0
        %v889 = vmul.f32 %v873, -900.0
        %v890 = vmul.f32 %v874, -900.0
        %v891 = vmul.f32 %v875, -900.0
        %v892 = vmul.f32 %v876, -900.0
        %v893 = vmul.f32 %v877, -900.0
        %v894 = vmul.f32 %v878, 1.442695
        %v895 = vpow.pop %v894
        %v896 = vmul.f32 %v879, 1.442695
        %v897 = vpow.pop %v896
        %v898 = vmul.f32 %v880, 1.442695
        %v899 = vpow.pop %v898
        %v900 = vmul.f32 %v881, 1.442695
        %v901 = vpow.pop %v900
        %v902 = vmul.f32 %v882, 1.442695
        %v903 = vpow.pop %v902
        %v904 = vmul.f32 %v883, 1.442695
        %v905 = vpow.pop %v904
        %v906 = vmul.f32 %v884, 1.442695
        %v907 = vpow.pop %v906
        %v908 = vmul.f32 %v885, 1.442695
        %v909 = vpow.pop %v908
        %v910 = vmul.f32 %v886, 1.442695
        %v911 = vpow.pop %v910
        %v912 = vmul.f32 %v887, 1.442695
        %v913 = vpow.pop %v912
        %v914 = vmul.f32 %v888, 1.442695
        %v915 = vpow.pop %v914
        %v916 = vmul.f32 %v889, 1.442695
        %v917 = vpow.pop %v916
        %v918 = vmul.f32 %v890, 1.442695
        %v919 = vpow.pop %v918
        %v920 = vmul.f32 %v891, 1.442695
        %v921 = vpow.pop %v920
        %v922 = vmul.f32 %v892, 1.442695
        %v923 = vpow.pop %v922
        %v924 = vmul.f32 %v893, 1.442695
        %v925 = vpow.pop %v924
        %v926 = vpack.c.bf16 %v903, %v895
        %v927 = vpack.c.bf16 %v905, %v897
        %v928 = vpack.c.bf16 %v907, %v899
        %v929 = vpack.c.bf16 %v909, %v901
        %v930 = vpack.c.bf16 %v919, %v911
        %v931 = vpack.c.bf16 %v921, %v913
        %v932 = vpack.c.bf16 %v923, %v915
        %v933 = vpack.c.bf16 %v925, %v917
        %s934 = scalar_lea.vmem %s2, 32
        %v935 = vld [vmem:[%s934] sm:$0xf]
        %v936 = vld [vmem:[%s934 + $0x4] sm:$0xf]
        %v937 = vld [vmem:[%s934 + $0x8] sm:$0xf]
        %v938 = vld [vmem:[%s934 + $0xc] sm:$0xf]
        %s939 = scalar_lea.vmem %s3, 96
        %v940 = vld [vmem:[%s939] sm:$0xff]
        %v941 = vld [vmem:[%s939 + $0x8] sm:$0xff]
        %v942 = vld [vmem:[%s939 + $0x10] sm:$0xff]
        %v943 = vld [vmem:[%s939 + $0x18] sm:$0xff]
        %945 = vset.pattern.permute.xlu0 0
        %946 = vperm.xlu0 %945, %v940
        %v947 = vpop.permute.xlu0 %946
        %950 = vset.pattern.permute.xlu0 0
        %951 = vperm.xlu0 %950, %v941
        %v952 = vpop.permute.xlu0 %951
        %955 = vset.pattern.permute.xlu0 0
        %956 = vperm.xlu0 %955, %v942
        %v957 = vpop.permute.xlu0 %956
        %960 = vset.pattern.permute.xlu0 0
        %961 = vperm.xlu0 %960, %v943
        %v962 = vpop.permute.xlu0 %961
        %v968 = vunpack.c.l.b16 %v935
        %v969 = vunpack.c.l.b16 %v936
        %v970 = vunpack.c.l.b16 %v937
        %v971 = vunpack.c.l.b16 %v938
        %v972 = vpack.c.b16 %v969, %v968
        %v973 = vpack.c.b16 %v971, %v970
        %v975 = vsel %vm525, %v972, 0
        %v978 = vsel %vm525, %v973, 0
        %980 = vmatprep.subr.bf16.mxu0 %v927
        %981 = vmatpush1.bf16.msra.mxu0 %v926
        %982 = vmatprep.subr.bf16.mxu0 %v931
        %983 = vmatpush1.bf16.msra.mxu0 %v930
        %984 = vmatprep.subr.bf16.mxu0 0
        %985 = vmatpush1.bf16.msra.mxu0 0
        %986 = vmatprep.subr.bf16.mxu0 0
        %987 = vmatpush1.bf16.msra.mxu0 0
        %988 = vmatprep.subr.bf16.mxu0 0
        %989 = vmatpush1.bf16.msra.mxu0 0
        %990 = vmatprep.subr.bf16.mxu0 0
        %991 = vmatpush1.bf16.msra.mxu0 0
        %992 = vmatprep.subr.bf16.mxu0 0
        %993 = vmatpush1.bf16.msra.mxu0 0
        %994 = vmatprep.subr.bf16.mxu0 0
        %995 = vmatpush1.bf16.msra.mxu0 0
        %996 = vmatprep.subr.bf16.mxu0 0
        %997 = vmatpush1.bf16.msra.mxu0 0
        %998 = vmatprep.subr.bf16.mxu0 0
        %999 = vmatpush1.bf16.msra.mxu0 0
        %1000 = vmatprep.subr.bf16.mxu0 0
        %1001 = vmatpush1.bf16.msra.mxu0 0
        %1002 = vmatprep.subr.bf16.mxu0 0
        %1003 = vmatpush1.bf16.msra.mxu0 0
        %1004 = vmatprep.subr.bf16.mxu0 0
        %1005 = vmatpush1.bf16.msra.mxu0 0
        %1006 = vmatprep.subr.bf16.mxu0 0
        %1007 = vmatpush1.bf16.msra.mxu0 0
        %1008 = vmatprep.subr.bf16.mxu0 0
        %1009 = vmatpush1.bf16.msra.mxu0 0
        %1010 = vmatprep.subr.bf16.mxu0 0
        %1011 = vmatpush1.bf16.msra.mxu0 0
        %1012 = vmatprep.mubr.bf16.mxu0 0
        %1013 = vmatmul.mubr.bf16.gmra.mrb[0].mxu0 %v975
        %v1014 = vpop.f32.mrb[0].mxu0
        %v1015 = vadd.f32 %v947, %v1014
        %v1016 = vpop.f32.mrb[0].mxu0
        %v1017 = vadd.f32 %v947, %v1016
        %v1018 = vpop.f32.mrb[0].mxu0
        %v1019 = vadd.f32 %v952, %v1018
        %v1020 = vpop.f32.mrb[0].mxu0
        %v1021 = vadd.f32 %v952, %v1020
        %1022 = vmatprep.mubr.bf16.mxu0 0
        %1023 = vmatmul.mubr.bf16.gmra.mrb[0].mxu0 %v978
        %v1024 = vpop.f32.mrb[0].mxu0
        %v1025 = vadd.f32 %v957, %v1024
        %v1026 = vpop.f32.mrb[0].mxu0
        %v1027 = vadd.f32 %v957, %v1026
        %v1028 = vpop.f32.mrb[0].mxu0
        %v1029 = vadd.f32 %v962, %v1028
        %v1030 = vpop.f32.mrb[0].mxu0
        %v1031 = vadd.f32 %v962, %v1030
        %1032 = vdwg.mxu0
        %1033 = vmatprep.subr.bf16.mxu0 %v929
        %1034 = vmatpush1.bf16.msra.mxu0 %v928
        %1035 = vmatprep.subr.bf16.mxu0 %v933
        %1036 = vmatpush1.bf16.msra.mxu0 %v932
        %1037 = vmatprep.subr.bf16.mxu0 0
        %1038 = vmatpush1.bf16.msra.mxu0 0
        %1039 = vmatprep.subr.bf16.mxu0 0
        %1040 = vmatpush1.bf16.msra.mxu0 0
        %1041 = vmatprep.subr.bf16.mxu0 0
        %1042 = vmatpush1.bf16.msra.mxu0 0
        %1043 = vmatprep.subr.bf16.mxu0 0
        %1044 = vmatpush1.bf16.msra.mxu0 0
        %1045 = vmatprep.subr.bf16.mxu0 0
        %1046 = vmatpush1.bf16.msra.mxu0 0
        %1047 = vmatprep.subr.bf16.mxu0 0
        %1048 = vmatpush1.bf16.msra.mxu0 0
        %1049 = vmatprep.subr.bf16.mxu0 0
        %1050 = vmatpush1.bf16.msra.mxu0 0
        %1051 = vmatprep.subr.bf16.mxu0 0
        %1052 = vmatpush1.bf16.msra.mxu0 0
        %1053 = vmatprep.subr.bf16.mxu0 0
        %1054 = vmatpush1.bf16.msra.mxu0 0
        %1055 = vmatprep.subr.bf16.mxu0 0
        %1056 = vmatpush1.bf16.msra.mxu0 0
        %1057 = vmatprep.subr.bf16.mxu0 0
        %1058 = vmatpush1.bf16.msra.mxu0 0
        %1059 = vmatprep.subr.bf16.mxu0 0
        %1060 = vmatpush1.bf16.msra.mxu0 0
        %1061 = vmatprep.subr.bf16.mxu0 0
        %1062 = vmatpush1.bf16.msra.mxu0 0
        %1063 = vmatprep.subr.bf16.mxu0 0
        %1064 = vmatpush1.bf16.msra.mxu0 0
        %1065 = vmatprep.mubr.bf16.mxu0 0
        %1066 = vmatmul.mubr.bf16.gmra.mrb[0].mxu0 %v975
        %v1067 = vpop.f32.mrb[0].mxu0
        %v1068 = vadd.f32 %v947, %v1067
        %v1069 = vpop.f32.mrb[0].mxu0
        %v1070 = vadd.f32 %v947, %v1069
        %v1071 = vpop.f32.mrb[0].mxu0
        %v1072 = vadd.f32 %v952, %v1071
        %v1073 = vpop.f32.mrb[0].mxu0
        %v1074 = vadd.f32 %v952, %v1073
        %1075 = vmatprep.mubr.bf16.mxu0 0
        %1076 = vmatmul.mubr.bf16.gmra.mrb[0].mxu0 %v978
        %v1077 = vpop.f32.mrb[0].mxu0
        %v1078 = vadd.f32 %v957, %v1077
        %v1079 = vpop.f32.mrb[0].mxu0
        %v1080 = vadd.f32 %v957, %v1079
        %v1081 = vpop.f32.mrb[0].mxu0
        %v1082 = vadd.f32 %v962, %v1081
        %v1083 = vpop.f32.mrb[0].mxu0
        %v1084 = vadd.f32 %v962, %v1083
        %1085 = vdwg.mxu0
        %v1086 = vmul.f32 %v1015, %v1015
        %v1087 = vmul.f32 %v1017, %v1017
        %v1088 = vmul.f32 %v1068, %v1068
        %v1089 = vmul.f32 %v1070, %v1070
        %v1090 = vmul.f32 %v1019, %v1019
        %v1091 = vmul.f32 %v1021, %v1021
        %v1092 = vmul.f32 %v1072, %v1072
        %v1093 = vmul.f32 %v1074, %v1074
        %v1094 = vmul.f32 %v1025, %v1025
        %v1095 = vmul.f32 %v1027, %v1027
        %v1096 = vmul.f32 %v1078, %v1078
        %v1097 = vmul.f32 %v1080, %v1080
        %v1098 = vmul.f32 %v1029, %v1029
        %v1099 = vmul.f32 %v1031, %v1031
        %v1100 = vmul.f32 %v1082, %v1082
        %v1101 = vmul.f32 %v1084, %v1084
        %v1102 = vmul.f32 %v1086, -900.0
        %v1103 = vmul.f32 %v1087, -900.0
        %v1104 = vmul.f32 %v1088, -900.0
        %v1105 = vmul.f32 %v1089, -900.0
        %v1106 = vmul.f32 %v1090, -900.0
        %v1107 = vmul.f32 %v1091, -900.0
        %v1108 = vmul.f32 %v1092, -900.0
        %v1109 = vmul.f32 %v1093, -900.0
        %v1110 = vmul.f32 %v1094, -900.0
        %v1111 = vmul.f32 %v1095, -900.0
        %v1112 = vmul.f32 %v1096, -900.0
        %v1113 = vmul.f32 %v1097, -900.0
        %v1114 = vmul.f32 %v1098, -900.0
        %v1115 = vmul.f32 %v1099, -900.0
        %v1116 = vmul.f32 %v1100, -900.0
        %v1117 = vmul.f32 %v1101, -900.0
        %v1118 = vmul.f32 %v1102, 1.442695
        %v1119 = vpow.pop %v1118
        %v1120 = vmul.f32 %v1103, 1.442695
        %v1121 = vpow.pop %v1120
        %v1122 = vmul.f32 %v1104, 1.442695
        %v1123 = vpow.pop %v1122
        %v1124 = vmul.f32 %v1105, 1.442695
        %v1125 = vpow.pop %v1124
        %v1126 = vmul.f32 %v1106, 1.442695
        %v1127 = vpow.pop %v1126
        %v1128 = vmul.f32 %v1107, 1.442695
        %v1129 = vpow.pop %v1128
        %v1130 = vmul.f32 %v1108, 1.442695
        %v1131 = vpow.pop %v1130
        %v1132 = vmul.f32 %v1109, 1.442695
        %v1133 = vpow.pop %v1132
        %v1134 = vmul.f32 %v1110, 1.442695
        %v1135 = vpow.pop %v1134
        %v1136 = vmul.f32 %v1111, 1.442695
        %v1137 = vpow.pop %v1136
        %v1138 = vmul.f32 %v1112, 1.442695
        %v1139 = vpow.pop %v1138
        %v1140 = vmul.f32 %v1113, 1.442695
        %v1141 = vpow.pop %v1140
        %v1142 = vmul.f32 %v1114, 1.442695
        %v1143 = vpow.pop %v1142
        %v1144 = vmul.f32 %v1115, 1.442695
        %v1145 = vpow.pop %v1144
        %v1146 = vmul.f32 %v1116, 1.442695
        %v1147 = vpow.pop %v1146
        %v1148 = vmul.f32 %v1117, 1.442695
        %v1149 = vpow.pop %v1148
        %v1150 = vpack.c.bf16 %v1127, %v1119
        %v1151 = vpack.c.bf16 %v1129, %v1121
        %v1152 = vpack.c.bf16 %v1131, %v1123
        %v1153 = vpack.c.bf16 %v1133, %v1125
        %v1154 = vpack.c.bf16 %v1143, %v1135
        %v1155 = vpack.c.bf16 %v1145, %v1137
        %v1156 = vpack.c.bf16 %v1147, %v1139
        %v1157 = vpack.c.bf16 %v1149, %v1141
        %v1158 = vld [vmem:[%s4] sm:$0x3]
        %v1160 = vsel %vm525, %v1158, 0
        %1162 = vmatprep.subr.bf16.mxu0 %v1151
        %1163 = vmatpush1.bf16.msra.mxu0 %v1150
        %1164 = vmatprep.subr.bf16.mxu0 %v1155
        %1165 = vmatpush1.bf16.msra.mxu0 %v1154
        %1166 = vmatprep.subr.bf16.mxu0 0
        %1167 = vmatpush1.bf16.msra.mxu0 0
        %1168 = vmatprep.subr.bf16.mxu0 0
        %1169 = vmatpush1.bf16.msra.mxu0 0
        %1170 = vmatprep.subr.bf16.mxu0 0
        %1171 = vmatpush1.bf16.msra.mxu0 0
        %1172 = vmatprep.subr.bf16.mxu0 0
        %1173 = vmatpush1.bf16.msra.mxu0 0
        %1174 = vmatprep.subr.bf16.mxu0 0
        %1175 = vmatpush1.bf16.msra.mxu0 0
        %1176 = vmatprep.subr.bf16.mxu0 0
        %1177 = vmatpush1.bf16.msra.mxu0 0
        %1178 = vmatprep.subr.bf16.mxu0 0
        %1179 = vmatpush1.bf16.msra.mxu0 0
        %1180 = vmatprep.subr.bf16.mxu0 0
        %1181 = vmatpush1.bf16.msra.mxu0 0
        %1182 = vmatprep.subr.bf16.mxu0 0
        %1183 = vmatpush1.bf16.msra.mxu0 0
        %1184 = vmatprep.subr.bf16.mxu0 0
        %1185 = vmatpush1.bf16.msra.mxu0 0
        %1186 = vmatprep.subr.bf16.mxu0 0
        %1187 = vmatpush1.bf16.msra.mxu0 0
        %1188 = vmatprep.subr.bf16.mxu0 0
        %1189 = vmatpush1.bf16.msra.mxu0 0
        %1190 = vmatprep.subr.bf16.mxu0 0
        %1191 = vmatpush1.bf16.msra.mxu0 0
        %1192 = vmatprep.subr.bf16.mxu0 0
        %1193 = vmatpush1.bf16.msra.mxu0 0
        %1194 = vmatprep.mubr.bf16.mxu0 0
        %1195 = vmatmul.mubr.bf16.gmra.mrb[0].mxu0 %v1160
        %v1196 = vpop.f32.mrb[0].mxu0
        %v1197 = vadd.f32 0.0, %v1196
        %v1198 = vpop.f32.mrb[0].mxu0
        %v1199 = vadd.f32 0.0, %v1198
        %v1200 = vpop.f32.mrb[0].mxu0
        %v1201 = vpop.f32.mrb[0].mxu0
        %1202 = vdwg.mxu0
        %1203 = vmatprep.subr.bf16.mxu0 %v1153
        %1204 = vmatpush1.bf16.msra.mxu0 %v1152
        %1205 = vmatprep.subr.bf16.mxu0 %v1157
        %1206 = vmatpush1.bf16.msra.mxu0 %v1156
        %1207 = vmatprep.subr.bf16.mxu0 0
        %1208 = vmatpush1.bf16.msra.mxu0 0
        %1209 = vmatprep.subr.bf16.mxu0 0
        %1210 = vmatpush1.bf16.msra.mxu0 0
        %1211 = vmatprep.subr.bf16.mxu0 0
        %1212 = vmatpush1.bf16.msra.mxu0 0
        %1213 = vmatprep.subr.bf16.mxu0 0
        %1214 = vmatpush1.bf16.msra.mxu0 0
        %1215 = vmatprep.subr.bf16.mxu0 0
        %1216 = vmatpush1.bf16.msra.mxu0 0
        %1217 = vmatprep.subr.bf16.mxu0 0
        %1218 = vmatpush1.bf16.msra.mxu0 0
        %1219 = vmatprep.subr.bf16.mxu0 0
        %1220 = vmatpush1.bf16.msra.mxu0 0
        %1221 = vmatprep.subr.bf16.mxu0 0
        %1222 = vmatpush1.bf16.msra.mxu0 0
        %1223 = vmatprep.subr.bf16.mxu0 0
        %1224 = vmatpush1.bf16.msra.mxu0 0
        %1225 = vmatprep.subr.bf16.mxu0 0
        %1226 = vmatpush1.bf16.msra.mxu0 0
        %1227 = vmatprep.subr.bf16.mxu0 0
        %1228 = vmatpush1.bf16.msra.mxu0 0
        %1229 = vmatprep.subr.bf16.mxu0 0
        %1230 = vmatpush1.bf16.msra.mxu0 0
        %1231 = vmatprep.subr.bf16.mxu0 0
        %1232 = vmatpush1.bf16.msra.mxu0 0
        %1233 = vmatprep.subr.bf16.mxu0 0
        %1234 = vmatpush1.bf16.msra.mxu0 0
        %1235 = vmatprep.mubr.bf16.mxu0 0
        %1236 = vmatmul.mubr.bf16.gmra.mrb[0].mxu0 %v1160
        %v1237 = vpop.f32.mrb[0].mxu0
        %v1238 = vadd.f32 0.0, %v1237
        %v1239 = vpop.f32.mrb[0].mxu0
        %v1240 = vadd.f32 0.0, %v1239
        %v1241 = vpop.f32.mrb[0].mxu0
        %v1242 = vpop.f32.mrb[0].mxu0
        %1243 = vdwg.mxu0
        %v1248 = vcombine.low %v1197, %v1199
        %v1249 = vcombine.low %v1238, %v1240
        %1252 = vst [vmem:[%s216] sm:$0x77] %v1248
        %1253 = vst [vmem:[%s216 + $0x8] sm:$0x77] %v1249
        %s1254 = sand.u32 %s137, 1
        %s1255 = scalar_lea.sflag [#allocation3], %s1254
        %s1256 = sand.u32 %s137, 1
        %s1257 = smul.addr %s1256, 16
        %s1258 = scalar_lea.vmem [#allocation2], %s1257
        // Predicated region
        $region41: #{tpu_custom_call.1} parent=39 // pred_check
          %p1259 = pneg %p147
        $region42: #{tpu_custom_call.1} parent=39 // pred_check_branch
          %1261 = sbr.rel (%p1259) target = $region44
        $region43: #{tpu_custom_call.1} parent=39 // pred_region
          %s1262 = smul.u32 4, %s19
          %s1264 = ssub.s32 256, 256
          %1265 = vsyncadd %s1255, %s1264
          %s1266 = smul.addr %s1262, 64
          %s1267 = scalar_lea.hbm %s5, %s1266
          %s1269 = sshll.u32 %s1258, 4
          %s1270 = int_to_ptr.vmem [resolvable:$true] %s1269
          %1272 = dma.vmem_to_hbm [thread:$0]  %s1270, 256, %s1267, %s1255
        $region44: #{tpu_custom_call.1} parent=39 // pred_fallthru
          _
      $region40: #{tpu_custom_call.1} parent=5 // pred_fallthru
        _
      %p1273 = scmp.le.s32.totalorder 2, %s14
      // Predicated region
      $region45: #{tpu_custom_call.1} parent=5 // pred_check
        %p1274 = pneg %p1273
      $region46: #{tpu_custom_call.1} parent=5 // pred_check_branch
        %1276 = sbr.rel (%p1274) target = $region48
      $region47: #{tpu_custom_call.1} parent=5 // pred_region
        %s1277 = ssub.s32 %s14, 2
        // Predicated region
        $region49: #{tpu_custom_call.1} parent=47 // pred_check
          %p1278 = pneg %p153
        $region50: #{tpu_custom_call.1} parent=47 // pred_check_branch
          %1280 = sbr.rel (%p1278) target = $region52
        $region51: #{tpu_custom_call.1} parent=47 // pred_region
          %s1281 = sand.u32 %s138, 1
          %s1282 = scalar_lea.sflag [#allocation3], %s1281
          %s1283 = sand.u32 %s138, 1
          %s1284 = smul.addr %s1283, 16
          %s1285 = scalar_lea.vmem [#allocation2], %s1284
          %1286 = dma.done %s1282, 256
        $region52: #{tpu_custom_call.1} parent=47 // pred_fallthru
          _
      $region48: #{tpu_custom_call.1} parent=5 // pred_fallthru
        _
    $region6: #{tpu_custom_call.1} parent=1 // loop_footer
      %s18 = sadd.s32 1, %s14
    $region7: #{tpu_custom_call.1} parent=1 // loop_footer_branch
      %13 = sbr.rel target = $region3
    $region8: #{tpu_custom_call.1} parent=1 // loop_exit
      _
    %1287 = vsyncpa [#allocation3], 1
    %s1288 = scalar_lea.sflag [#allocation3], 1
    %1289 = vsyncpa %s1288, 1

</llo_original>
